<compile_context>
chip_gen: v5e
topology: v5e:2x2
jax: 0.10.0
libtpu: 0.0.40
codegen_flags: <defaults>
</compile_context>

<pallas_src>
import functools
import re

import jax
import jax.numpy as jnp
import numpy as np
from jax.experimental import pallas as pl
from jax.experimental.pallas import tpu as pltpu


def _round_up(x: int, m: int) -> int:
    return ((x + m - 1) // m) * m


def _cdiv(a: int, b: int) -> int:
    return (a + b - 1) // b


# ----------------------------------------------------------------------------- kernel ---

def _paradis_partial_kernel(pred_ref, tgt_ref, lw_ref, out_ref, *,
                            delta, use_huber, R, HW):
    """Accumulates lat-weighted per-row partial sums into a resident (TR, 128) block."""
    i = pl.program_id(0)          # row blocks ("parallel")
    j = pl.program_id(1)          # column blocks (reduction, "arbitrary")
    nI = pl.num_programs(0)
    nJ = pl.num_programs(1)
    TR, TC = pred_ref.shape
    n_chunks = TC // 128

    col_ragged = (HW % TC) != 0   # static
    row_ragged = (R % TR) != 0    # static

    @pl.when(j == 0)
    def _init():
        out_ref[...] = jnp.zeros_like(out_ref)

    def chunk_wl(k, valid):
        # Lane-aligned, 128-wide static slices of the refs -> no VMEM copies.
        p = pred_ref[:, k * 128:(k + 1) * 128].astype(jnp.float32)
        t = tgt_ref[:, k * 128:(k + 1) * 128].astype(jnp.float32)
        err = p - t
        if valid is not None:
            # Select (not multiply-by-zero) so garbage/NaN in over-read tails vanishes.
            err = jnp.where(valid, err, 0.0)
        if use_huber:
            abs_err = jnp.abs(err)
            small = abs_err if delta == 1.0 else delta * abs_err
            large = 0.5 * (err * err)
            # sigmoid(2*(|e|-delta)) == 0.5*(1 + tanh(|e|-delta)): one EUP op.
            w = 0.5 * (1.0 + jnp.tanh(abs_err - delta))
            loss = small + w * (large - small)      # == (1-w)*small + w*large
        else:  # mse, reduction='none'
            loss = err * err
        # Per-column latitude weight, (1,128) sublane-broadcast.
        return loss * lw_ref[:, k * 128:(k + 1) * 128]

    def accumulate(masked):
        row_ok = None
        lane = None
        if masked:
            lane = jax.lax.broadcasted_iota(jnp.int32, (TR, 128), 1)
            if row_ragged:
                rows = jax.lax.broadcasted_iota(jnp.int32, (TR, 128), 0) + i * TR
                row_ok = rows < R
        acc = None
        for k in range(n_chunks):
            valid = None
            if masked:
                if col_ragged:
                    valid = (j * TC + k * 128 + lane) < HW
                if row_ragged:
                    valid = row_ok if valid is None else jnp.logical_and(valid, row_ok)
            wl = chunk_wl(k, valid)
            acc = wl if acc is None else acc + wl
        out_ref[...] = out_ref[...] + acc

    if not (col_ragged or row_ragged):
        accumulate(masked=False)
    else:
        edge = None
        if col_ragged:
            edge = (j == nJ - 1)
        if row_ragged:
            e2 = (i == nI - 1)
            edge = e2 if edge is None else jnp.logical_or(edge, e2)

        @pl.when(jnp.logical_not(edge))
        def _hot():
            accumulate(masked=False)

        @pl.when(edge)
        def _cold():
            accumulate(masked=True)


# ---------------------------------------------------------------------------- wrapper ---

def _chip_defaults():
    kind = ""
    try:
        kind = jax.devices()[0].device_kind.lower()
    except Exception:
        pass
    if "v7" in kind or "7x" in kind:
        # v7x: 2 TensorCores/chip, 64 MiB physical VMEM per TC.
        return dict(two_cores=True, block_bytes=4 << 20, vmem_cap=56 << 20)
    # v5e / v6e: 1 TensorCore, 128 MiB physical VMEM.
    return dict(two_cores=False, block_bytes=8 << 20, vmem_cap=96 << 20)


def paradis_loss_pallas(pred, target, feature_weights, lat_weights, *,
                        delta=1.0, use_huber=True, apply_latitude_weights=True,
                        lane_tile_max=4096, block_bytes=None, vmem_limit_bytes=None):
    B, C, H, W = pred.shape
    R, HW = B * C, H * W
    itemsize = jnp.dtype(pred.dtype).itemsize
    row_mult = max(8, 32 // max(1, itemsize))          # 8 for f32, 16 for bf16

    chip = _chip_defaults()
    if block_bytes is None:
        block_bytes = chip["block_bytes"]

    # --- tile selection (ragged edges are masked in-kernel; no host padding of inputs) ---
    TC = min(_round_up(HW, 128), lane_tile_max)         # lane tile, multiple of 128
    target_rows = max(row_mult,
                      (block_bytes // (TC * itemsize)) // row_mult * row_mult)
    TR_full = min(target_rows, _round_up(R, row_mult))
    if chip["two_cores"] and R > row_mult:
        # Expose an EVEN number of row blocks so both v7x TensorCores get balanced work.
        n_blocks = max(2, _cdiv(R, TR_full))
        if n_blocks % 2:
            n_blocks += 1
        TR = min(_round_up(_cdiv(R, n_blocks), row_mult), _round_up(R, row_mult))
    else:
        TR = TR_full
    nI = _cdiv(R, TR)
    nJ = _cdiv(HW, TC)
    Rp = nI * TR          # only the tiny (Rp,128) partials / fw vector see this pad
    HWp = nJ * TC         # only the tiny latitude-weight vector sees this pad

    # --- lane-dense 2D views: metadata-only reshape, NO extra HBM pass ---
    pred2 = pred.reshape(R, HW)
    tgt2 = target.reshape(R, HW)

    if apply_latitude_weights:
        lw_h = lat_weights.astype(jnp.float32)
    else:
        lw_h = jnp.ones((H,), jnp.float32)
    lw_cols = jnp.repeat(lw_h, W)                        # per-column weight, length HW
    lw_cols = jnp.pad(lw_cols, (0, HWp - HW)).reshape(1, HWp)

    fw_rows = jnp.tile(feature_weights.astype(jnp.float32), B)   # per-row weight, length R
    fw_rows = jnp.pad(fw_rows, (0, Rp - R))

    kernel = functools.partial(_paradis_partial_kernel,
                               delta=float(delta), use_huber=use_huber, R=R, HW=HW)

    if vmem_limit_bytes is None:
        in_block = TR * TC * itemsize
        needed = 2 * 2 * in_block + 2 * TR * 128 * 4 + 2 * TC * 4 + (8 << 20)
        vmem_limit_bytes = int(min(max(needed, 32 << 20), chip["vmem_cap"]))

    partials = pl.pallas_call(
        kernel,
        out_shape=jax.ShapeDtypeStruct((Rp, 128), jnp.float32),
        grid_spec=pltpu.PrefetchScalarGridSpec(
            num_scalar_prefetch=0,
            grid=(nI, nJ),
            in_specs=[
                pl.BlockSpec((TR, TC), lambda i, j: (i, j)),
                pl.BlockSpec((TR, TC), lambda i, j: (i, j)),
                pl.BlockSpec((1, TC), lambda i, j: (0, j)),
            ],
            out_specs=pl.BlockSpec((TR, 128), lambda i, j: (i, 0)),
        ),
        compiler_params=pltpu.CompilerParams(
            dimension_semantics=("parallel", "arbitrary"),
            vmem_limit_bytes=vmem_limit_bytes,
        ),
    )(pred2, tgt2, lw_cols)

    # Tiny final combine in XLA: cross-lane sum per row, feature-weight dot, mean.
    row_sums = jnp.sum(partials, axis=1)                 # (Rp,)
    total_elems = float(B * C * H * W)                   # unpadded count -> unbiased mean
    return jnp.dot(row_sums, fw_rows) / total_elems


# ------------------------------------------------------------------ parameter setup (glue) ---

def compute_latitude_weights(grid_lat):
    diff = np.diff(np.asarray(grid_lat))
    if not np.allclose(diff, diff[0]):
        raise ValueError("Grid is not uniformly spaced")
    if np.any(np.isclose(np.abs(np.asarray(grid_lat)), 90.0)):
        raise ValueError("Grid must not contain poles!")
    weights = np.cos(np.deg2rad(np.asarray(grid_lat, dtype=np.float32)))
    return jnp.asarray(weights / weights.mean(), dtype=jnp.float32)


def create_feature_weights(pressure_levels, num_features, num_surface_vars,
                           var_loss_weights, output_name_order,
                           apply_pressure_weights=True, flip_geopotential_weights=False):
    pressure_levels = np.asarray(pressure_levels, dtype=np.float32)
    num_levels = len(pressure_levels)
    num_atmospheric_vars = num_features - num_surface_vars
    var_loss_weights = np.asarray(var_loss_weights, dtype=np.float32)

    if apply_pressure_weights:
        pw = np.where(pressure_levels / 1000.0 > 0.2, 0.2, pressure_levels / 1000.0)
    else:
        pw = np.ones(num_levels, dtype=np.float32)

    feature_weights = np.zeros(num_features, dtype=np.float32)
    for i in range(0, num_atmospheric_vars, num_levels):
        var_name = re.sub(r"_h\d+$", "", output_name_order[i])
        base = var_loss_weights[i:i + num_levels]
        if flip_geopotential_weights and var_name == "geopotential":
            feature_weights[i:i + num_levels] = base * pw[::-1]
        else:
            feature_weights[i:i + num_levels] = base * pw
    feature_weights[num_atmospheric_vars:] = var_loss_weights[num_atmospheric_vars:]
    return jnp.asarray(feature_weights, dtype=jnp.float32)


# ------------------------------------------------------------------------- reference ---

def paradis_loss_ref(pred, target, feature_weights, lat_weights,
                     *, delta, use_huber, apply_latitude_weights):
    err = pred.astype(jnp.float32) - target.astype(jnp.float32)
    if use_huber:
        abs_err = jnp.abs(err)
        small_error = delta * abs_err
        large_error = 0.5 * err ** 2
        w = 1.0 / (1.0 + jnp.exp(-2.0 * (abs_err - delta)))
        loss = (1.0 - w) * small_error + w * large_error
    else:
        loss = err ** 2
    wl = loss * feature_weights.reshape(1, -1, 1, 1)
    if apply_latitude_weights:
        wl = wl * lat_weights.reshape(1, 1, -1, 1)
    return jnp.mean(wl)


# ----------------------------------------------------------------------------- main ---

if __name__ == "__main__":
    B, H, W = 2, 16, 16                       # batch, lat, lon
    pressure_levels = jnp.array([100.0, 300.0, 700.0, 1000.0], dtype=jnp.float32)
    num_levels = pressure_levels.shape[0]     # 4
    num_surface_vars = 2
    num_atm_types = 2                         # e.g. temperature, u_wind
    num_features = num_atm_types * num_levels + num_surface_vars  # C = 10

    output_name_order = (
        [f"temperature_h{int(p)}" for p in np.asarray(pressure_levels)]
        + [f"u_wind_h{int(p)}" for p in np.asarray(pressure_levels)]
        + ["2m_temperature", "precipitation"]
    )

    var_loss_weights = jnp.linspace(0.5, 1.5, num_features, dtype=jnp.float32)
    lat_grid = jnp.linspace(-78.75, 78.75, H, dtype=jnp.float32)  # uniform, no poles

    lat_weights = compute_latitude_weights(lat_grid)
    feature_weights = create_feature_weights(
        pressure_levels, num_features, num_surface_vars,
        var_loss_weights, output_name_order,
    )

    key = jax.random.PRNGKey(0)
    kp, kt = jax.random.split(key)
    pred = jax.random.normal(kp, (B, num_features, H, W), dtype=jnp.float32)
    target = jax.random.normal(kt, (B, num_features, H, W), dtype=jnp.float32)

    configs = [
        dict(use_huber=True, apply_latitude_weights=True),    # reversed_huber + lat weights
        dict(use_huber=False, apply_latitude_weights=True),   # mse + lat weights
        dict(use_huber=True, apply_latitude_weights=False),   # reversed_huber, no lat weights
    ]
    for cfg in configs:
        out = paradis_loss_pallas(pred, target, feature_weights, lat_weights,
                                  delta=1.0, **cfg)
        out = jax.block_until_ready(out)
        ref = paradis_loss_ref(pred, target, feature_weights, lat_weights,
                               delta=1.0, **cfg)
        ref = jax.block_until_ready(ref)
        np.testing.assert_allclose(np.asarray(out), np.asarray(ref),
                                   rtol=1e-4, atol=1e-6)

    print("KERNEL_OK")
</pallas_src>

<mosaic_0001>
module attributes {stable_mosaic.version = 11 : i64} {
  func.func @_paradis_partial_kernel(%arg0: i32, %arg1: i32, %arg2: memref<24x256xf32, #tpu.memory_space<vmem>>, %arg3: memref<24x256xf32, #tpu.memory_space<vmem>>, %arg4: memref<1x256xf32, #tpu.memory_space<vmem>>, %arg5: memref<24x128xf32, #tpu.memory_space<vmem>>) attributes {dimension_semantics = [#tpu.dimension_semantics<parallel>, #tpu.dimension_semantics<arbitrary>], iteration_bounds = array<i64: 1, 1>, scalar_prefetch = 0 : i64, scratch_operands = 0 : i64, tpu.core_type = #tpu.core_type<tc>, window_params = [{transform_indices = @transform_0, window_bounds = array<i64: 24, 256>}, {transform_indices = @transform_1, window_bounds = array<i64: 24, 256>}, {transform_indices = @transform_2, window_bounds = array<i64: 1, 256>}, {transform_indices = @transform_3, window_bounds = array<i64: 24, 128>}]} {
    %c0_i32 = arith.constant 0 : i32
    %0 = arith.cmpi eq, %arg1, %c0_i32 : i32
    %1 = arith.extui %0 : i1 to i32
    %c0_i32_0 = arith.constant 0 : i32
    %2 = arith.cmpi ne, %1, %c0_i32_0 : i32
    scf.if %2 {
      %cst = arith.constant 0.000000e+00 : f32
      %9 = vector.broadcast %cst : f32 to vector<24x128xf32>
      %c0 = arith.constant 0 : index
      %c0_4 = arith.constant 0 : index
      %10 = vector.load %arg5[%c0, %c0_4] : memref<24x128xf32, #tpu.memory_space<vmem>>, vector<24x128xf32>
      tpu.vector_store %arg5[%c0, %c0_4], %9 {strides = array<i32>} : memref<24x128xf32, #tpu.memory_space<vmem>>, vector<24x128xf32>,
    } else {
    }
    %c0_i32_1 = arith.constant 0 : i32
    %3 = arith.cmpi eq, %arg0, %c0_i32_1 : i32
    %true = arith.constant true
    %4 = arith.xori %3, %true : i1
    %5 = arith.extui %4 : i1 to i32
    %c0_i32_2 = arith.constant 0 : i32
    %6 = arith.cmpi ne, %5, %c0_i32_2 : i32
    scf.if %6 {
      %c0 = arith.constant 0 : index
      %c0_4 = arith.constant 0 : index
      %9 = vector.load %arg2[%c0, %c0_4] : memref<24x256xf32, #tpu.memory_space<vmem>>, vector<24x128xf32>
      %c0_5 = arith.constant 0 : index
      %c0_6 = arith.constant 0 : index
      %10 = vector.load %arg3[%c0_5, %c0_6] : memref<24x256xf32, #tpu.memory_space<vmem>>, vector<24x128xf32>
      %11 = arith.subf %9, %10 : vector<24x128xf32>
      %12 = math.absf %11 : vector<24x128xf32>
      %13 = arith.mulf %11, %11 : vector<24x128xf32>
      %cst = arith.constant 5.000000e-01 : f32
      %14 = vector.broadcast %cst : f32 to vector<24x128xf32>
      %15 = arith.mulf %14, %13 : vector<24x128xf32>
      %cst_7 = arith.constant 1.000000e+00 : f32
      %16 = vector.broadcast %cst_7 : f32 to vector<24x128xf32>
      %17 = arith.subf %12, %16 : vector<24x128xf32>
      %18 = math.tanh %17 : vector<24x128xf32>
      %cst_8 = arith.constant 1.000000e+00 : f32
      %19 = vector.broadcast %cst_8 : f32 to vector<24x128xf32>
      %20 = arith.addf %19, %18 : vector<24x128xf32>
      %cst_9 = arith.constant 5.000000e-01 : f32
      %21 = vector.broadcast %cst_9 : f32 to vector<24x128xf32>
      %22 = arith.mulf %21, %20 : vector<24x128xf32>
      %23 = arith.subf %15, %12 : vector<24x128xf32>
      %24 = arith.mulf %22, %23 : vector<24x128xf32>
      %25 = arith.addf %12, %24 : vector<24x128xf32>
      %c0_10 = arith.constant 0 : index
      %c0_11 = arith.constant 0 : index
      %26 = vector.load %arg4[%c0_10, %c0_11] : memref<1x256xf32, #tpu.memory_space<vmem>>, vector<1x128xf32>
      %27 = vector.broadcast %26 : vector<1x128xf32> to vector<24x128xf32>
      %28 = arith.mulf %25, %27 : vector<24x128xf32>
      %c0_12 = arith.constant 0 : index
      %c128 = arith.constant 128 : index
      %29 = vector.load %arg2[%c0_12, %c128] : memref<24x256xf32, #tpu.memory_space<vmem>>, vector<24x128xf32>
      %c0_13 = arith.constant 0 : index
      %c128_14 = arith.constant 128 : index
      %30 = vector.load %arg3[%c0_13, %c128_14] : memref<24x256xf32, #tpu.memory_space<vmem>>, vector<24x128xf32>
      %31 = arith.subf %29, %30 : vector<24x128xf32>
      %32 = math.absf %31 : vector<24x128xf32>
      %33 = arith.mulf %31, %31 : vector<24x128xf32>
      %cst_15 = arith.constant 5.000000e-01 : f32
      %34 = vector.broadcast %cst_15 : f32 to vector<24x128xf32>
      %35 = arith.mulf %34, %33 : vector<24x128xf32>
      %cst_16 = arith.constant 1.000000e+00 : f32
      %36 = vector.broadcast %cst_16 : f32 to vector<24x128xf32>
      %37 = arith.subf %32, %36 : vector<24x128xf32>
      %38 = math.tanh %37 : vector<24x128xf32>
      %cst_17 = arith.constant 1.000000e+00 : f32
      %39 = vector.broadcast %cst_17 : f32 to vector<24x128xf32>
      %40 = arith.addf %39, %38 : vector<24x128xf32>
      %cst_18 = arith.constant 5.000000e-01 : f32
      %41 = vector.broadcast %cst_18 : f32 to vector<24x128xf32>
      %42 = arith.mulf %41, %40 : vector<24x128xf32>
      %43 = arith.subf %35, %32 : vector<24x128xf32>
      %44 = arith.mulf %42, %43 : vector<24x128xf32>
      %45 = arith.addf %32, %44 : vector<24x128xf32>
      %c0_19 = arith.constant 0 : index
      %c128_20 = arith.constant 128 : index
      %46 = vector.load %arg4[%c0_19, %c128_20] : memref<1x256xf32, #tpu.memory_space<vmem>>, vector<1x128xf32>
      %47 = vector.broadcast %46 : vector<1x128xf32> to vector<24x128xf32>
      %48 = arith.mulf %45, %47 : vector<24x128xf32>
      %49 = arith.addf %28, %48 : vector<24x128xf32>
      %c0_21 = arith.constant 0 : index
      %c0_22 = arith.constant 0 : index
      %50 = vector.load %arg5[%c0_21, %c0_22] : memref<24x128xf32, #tpu.memory_space<vmem>>, vector<24x128xf32>
      %51 = arith.addf %50, %49 : vector<24x128xf32>
      %c0_23 = arith.constant 0 : index
      %c0_24 = arith.constant 0 : index
      %52 = vector.load %arg5[%c0_23, %c0_24] : memref<24x128xf32, #tpu.memory_space<vmem>>, vector<24x128xf32>
      tpu.vector_store %arg5[%c0_23, %c0_24], %51 {strides = array<i32>} : memref<24x128xf32, #tpu.memory_space<vmem>>, vector<24x128xf32>,
    } else {
    }
    %7 = arith.extui %3 : i1 to i32
    %c0_i32_3 = arith.constant 0 : i32
    %8 = arith.cmpi ne, %7, %c0_i32_3 : i32
    scf.if %8 {
      %9 = tpu.iota {dimensions = array<i32: 0>} : vector<24x128xi32>
      %c24_i32 = arith.constant 24 : i32
      %10 = arith.muli %arg0, %c24_i32 : i32
      %11 = vector.broadcast %10 : i32 to vector<24x128xi32>
      %12 = arith.addi %9, %11 : vector<24x128xi32>
      %c20_i32 = arith.constant 20 : i32
      %13 = vector.broadcast %c20_i32 : i32 to vector<24x128xi32>
      %14 = arith.cmpi slt, %12, %13 : vector<24x128xi32>
      %c0 = arith.constant 0 : index
      %c0_4 = arith.constant 0 : index
      %15 = vector.load %arg2[%c0, %c0_4] : memref<24x256xf32, #tpu.memory_space<vmem>>, vector<24x128xf32>
      %c0_5 = arith.constant 0 : index
      %c0_6 = arith.constant 0 : index
      %16 = vector.load %arg3[%c0_5, %c0_6] : memref<24x256xf32, #tpu.memory_space<vmem>>, vector<24x128xf32>
      %17 = arith.subf %15, %16 : vector<24x128xf32>
      %cst = arith.constant 0.000000e+00 : f32
      %18 = vector.broadcast %cst : f32 to vector<24x128xf32>
      %19 = arith.select %14, %17, %18 : vector<24x128xi1>, vector<24x128xf32>
      %20 = math.absf %19 : vector<24x128xf32>
      %21 = arith.mulf %19, %19 : vector<24x128xf32>
      %cst_7 = arith.constant 5.000000e-01 : f32
      %22 = vector.broadcast %cst_7 : f32 to vector<24x128xf32>
      %23 = arith.mulf %22, %21 : vector<24x128xf32>
      %cst_8 = arith.constant 1.000000e+00 : f32
      %24 = vector.broadcast %cst_8 : f32 to vector<24x128xf32>
      %25 = arith.subf %20, %24 : vector<24x128xf32>
      %26 = math.tanh %25 : vector<24x128xf32>
      %cst_9 = arith.constant 1.000000e+00 : f32
      %27 = vector.broadcast %cst_9 : f32 to vector<24x128xf32>
      %28 = arith.addf %27, %26 : vector<24x128xf32>
      %cst_10 = arith.constant 5.000000e-01 : f32
      %29 = vector.broadcast %cst_10 : f32 to vector<24x128xf32>
      %30 = arith.mulf %29, %28 : vector<24x128xf32>
      %31 = arith.subf %23, %20 : vector<24x128xf32>
      %32 = arith.mulf %30, %31 : vector<24x128xf32>
      %33 = arith.addf %20, %32 : vector<24x128xf32>
      %c0_11 = arith.constant 0 : index
      %c0_12 = arith.constant 0 : index
      %34 = vector.load %arg4[%c0_11, %c0_12] : memref<1x256xf32, #tpu.memory_space<vmem>>, vector<1x128xf32>
      %35 = vector.broadcast %34 : vector<1x128xf32> to vector<24x128xf32>
      %36 = arith.mulf %33, %35 : vector<24x128xf32>
      %c0_13 = arith.constant 0 : index
      %c128 = arith.constant 128 : index
      %37 = vector.load %arg2[%c0_13, %c128] : memref<24x256xf32, #tpu.memory_space<vmem>>, vector<24x128xf32>
      %c0_14 = arith.constant 0 : index
      %c128_15 = arith.constant 128 : index
      %38 = vector.load %arg3[%c0_14, %c128_15] : memref<24x256xf32, #tpu.memory_space<vmem>>, vector<24x128xf32>
      %39 = arith.subf %37, %38 : vector<24x128xf32>
      %cst_16 = arith.constant 0.000000e+00 : f32
      %40 = vector.broadcast %cst_16 : f32 to vector<24x128xf32>
      %41 = arith.select %14, %39, %40 : vector<24x128xi1>, vector<24x128xf32>
      %42 = math.absf %41 : vector<24x128xf32>
      %43 = arith.mulf %41, %41 : vector<24x128xf32>
      %cst_17 = arith.constant 5.000000e-01 : f32
      %44 = vector.broadcast %cst_17 : f32 to vector<24x128xf32>
      %45 = arith.mulf %44, %43 : vector<24x128xf32>
      %cst_18 = arith.constant 1.000000e+00 : f32
      %46 = vector.broadcast %cst_18 : f32 to vector<24x128xf32>
      %47 = arith.subf %42, %46 : vector<24x128xf32>
      %48 = math.tanh %47 : vector<24x128xf32>
      %cst_19 = arith.constant 1.000000e+00 : f32
      %49 = vector.broadcast %cst_19 : f32 to vector<24x128xf32>
      %50 = arith.addf %49, %48 : vector<24x128xf32>
      %cst_20 = arith.constant 5.000000e-01 : f32
      %51 = vector.broadcast %cst_20 : f32 to vector<24x128xf32>
      %52 = arith.mulf %51, %50 : vector<24x128xf32>
      %53 = arith.subf %45, %42 : vector<24x128xf32>
      %54 = arith.mulf %52, %53 : vector<24x128xf32>
      %55 = arith.addf %42, %54 : vector<24x128xf32>
      %c0_21 = arith.constant 0 : index
      %c128_22 = arith.constant 128 : index
      %56 = vector.load %arg4[%c0_21, %c128_22] : memref<1x256xf32, #tpu.memory_space<vmem>>, vector<1x128xf32>
      %57 = vector.broadcast %56 : vector<1x128xf32> to vector<24x128xf32>
      %58 = arith.mulf %55, %57 : vector<24x128xf32>
      %59 = arith.addf %36, %58 : vector<24x128xf32>
      %c0_23 = arith.constant 0 : index
      %c0_24 = arith.constant 0 : index
      %60 = vector.load %arg5[%c0_23, %c0_24] : memref<24x128xf32, #tpu.memory_space<vmem>>, vector<24x128xf32>
      %61 = arith.addf %60, %59 : vector<24x128xf32>
      %c0_25 = arith.constant 0 : index
      %c0_26 = arith.constant 0 : index
      %62 = vector.load %arg5[%c0_25, %c0_26] : memref<24x128xf32, #tpu.memory_space<vmem>>, vector<24x128xf32>
      tpu.vector_store %arg5[%c0_25, %c0_26], %61 {strides = array<i32>} : memref<24x128xf32, #tpu.memory_space<vmem>>, vector<24x128xf32>,
    } else {
    }
    return
  }
  func.func @transform_0(%arg0: i32, %arg1: i32) -> (i32, i32) {
    %c0_i32 = arith.constant 0 : i32
    return %arg0, %arg1 : i32, i32
  }
  func.func @transform_1(%arg0: i32, %arg1: i32) -> (i32, i32) {
    %c0_i32 = arith.constant 0 : i32
    return %arg0, %arg1 : i32, i32
  }
  func.func @transform_2(%arg0: i32, %arg1: i32) -> (i32, i32) {
    %c0_i32 = arith.constant 0 : i32
    %c0_i32_0 = arith.constant 0 : i32
    return %c0_i32, %arg1 : i32, i32
  }
  func.func @transform_3(%arg0: i32, %arg1: i32) -> (i32, i32) {
    %c0_i32 = arith.constant 0 : i32
    %c0_i32_0 = arith.constant 0 : i32
    return %arg0, %c0_i32 : i32, i32
  }
}

</mosaic_0001>

<llo_original>
// kernel: tpu_custom_call.1
$region0: #{tpu_custom_call.1}
  #allocation0 [shape = 'u32[]', space=smem, size = 0x4, offset = 0x4, fixed_abs, tag = 'smem constant byte address 0x4 - core index']
  #allocation1 [shape = 'u32[72,128]{1,0:T(1,128)}', space=vmem, size = 0x9000, scoped, tag = 'internal scratch']
  %s0 = inlined_call_operand.hbm [shape: f32[20,256], index: 0, kind: input, shape index: {}]
  %s1 = inlined_call_operand.hbm [shape: f32[20,256], index: 1, kind: input, shape index: {}]
  %s2 = inlined_call_operand.hbm [shape: f32[1,256], index: 2, kind: input, shape index: {}]
  %s3 = inlined_call_operand.hbm [shape: f32[24,128], index: 3, kind: output, shape index: {}]
  %s4 = sld [smem:[#allocation0]]
  $region46: #{tpu_custom_call.1} parent=0
    _
  %s6 = ssub.s32 1, %s4
  %s7 = scalar_select 0, %s6, %s4
  $region1: #{tpu_custom_call.1} parent=0
    #allocation2 [shape = 'u8[24576]{0}', space=vmem, size = 0x6000, scoped, tag = 'input window, operand 0, single buffered']
    #allocation3 [shape = 's32[1]{0}', space=sflag, size = 0x4, scoped, tag = 'scoped memory for tpu_custom_call.1']
    #allocation4 [shape = 's32[1]{0}', space=sflag, size = 0x4, scoped, tag = 'scoped memory for tpu_custom_call.1']
    #allocation5 [shape = 'u8[24576]{0}', space=vmem, size = 0x6000, scoped, tag = 'input window, operand 1, single buffered']
    #allocation6 [shape = 's32[1]{0}', space=sflag, size = 0x4, scoped, tag = 'scoped memory for tpu_custom_call.1']
    #allocation7 [shape = 'u8[1024]{0}', space=vmem, size = 0x400, scoped, tag = 'input window, operand 2, single buffered']
    #allocation8 [shape = 'u8[12288]{0}', space=vmem, size = 0x3000, scoped, tag = 'output window, operand 0, single buffered']
    %8 = vsyncpa [#allocation3], 0
    %9 = vsyncpa [#allocation6], 0
    %10 = vsyncpa [#allocation4], 0
    // Predicated region
    $region2: #{tpu_custom_call.1} parent=1 // pred_check
      _
    $region3: #{tpu_custom_call.1} parent=1 // pred_check_branch
      %12 = sbr.rel (0) target = $region5
    $region4: #{tpu_custom_call.1} parent=1 // pred_region
      %14 = vsyncadd [#allocation3], 0
      %s15 = sshll.u32 %s0, 4
      %s16 = int_to_ptr.hbm [resolvable:$true] %s15
      %s17 = sshll.u32 [#allocation2], 4
      %s18 = int_to_ptr.vmem [resolvable:$true] %s17
      %23 = dma.hbm_to_vmem [thread:$0]  %s16, 768, %s18, [#allocation3], 256, 256, 16
    $region5: #{tpu_custom_call.1} parent=1 // pred_fallthru
      _
    // Predicated region
    $region6: #{tpu_custom_call.1} parent=1 // pred_check
      _
    $region7: #{tpu_custom_call.1} parent=1 // pred_check_branch
      %25 = sbr.rel (0) target = $region9
    $region8: #{tpu_custom_call.1} parent=1 // pred_region
      %27 = vsyncadd [#allocation6], 0
      %s28 = sshll.u32 %s1, 4
      %s29 = int_to_ptr.hbm [resolvable:$true] %s28
      %s30 = sshll.u32 [#allocation5], 4
      %s31 = int_to_ptr.vmem [resolvable:$true] %s30
      %36 = dma.hbm_to_vmem [thread:$0]  %s29, 768, %s31, [#allocation6], 256, 256, 16
    $region9: #{tpu_custom_call.1} parent=1 // pred_fallthru
      _
    // Predicated region
    $region10: #{tpu_custom_call.1} parent=1 // pred_check
      _
    $region11: #{tpu_custom_call.1} parent=1 // pred_check_branch
      %38 = sbr.rel (0) target = $region13
    $region12: #{tpu_custom_call.1} parent=1 // pred_region
      %40 = vsyncadd [#allocation6], 0
      %s42 = sshll.u32 %s2, 4
      %s43 = int_to_ptr.hbm [resolvable:$true] %s42
      %s44 = sshll.u32 [#allocation7], 4
      %s45 = int_to_ptr.vmem [resolvable:$true] %s44
      %47 = dma.hbm_to_vmem [thread:$0]  %s43, 32, %s45, [#allocation6]
    $region13: #{tpu_custom_call.1} parent=1 // pred_fallthru
      _
    // Predicated region
    $region14: #{tpu_custom_call.1} parent=1 // pred_check
      _
    $region15: #{tpu_custom_call.1} parent=1 // pred_check_branch
      %49 = sbr.rel (0) target = $region17
    $region16: #{tpu_custom_call.1} parent=1 // pred_region
      %51 = dma.done [#allocation3], 768
    $region17: #{tpu_custom_call.1} parent=1 // pred_fallthru
      _
    // Predicated region
    $region18: #{tpu_custom_call.1} parent=1 // pred_check
      _
    $region19: #{tpu_custom_call.1} parent=1 // pred_check_branch
      %53 = sbr.rel (0) target = $region21
    $region20: #{tpu_custom_call.1} parent=1 // pred_region
      %55 = dma.done [#allocation6], 768
    $region21: #{tpu_custom_call.1} parent=1 // pred_fallthru
      _
    // Predicated region
    $region22: #{tpu_custom_call.1} parent=1 // pred_check
      _
    $region23: #{tpu_custom_call.1} parent=1 // pred_check_branch
      %57 = sbr.rel (0) target = $region25
    $region24: #{tpu_custom_call.1} parent=1 // pred_region
      %59 = dma.done [#allocation6], 32
    $region25: #{tpu_custom_call.1} parent=1 // pred_fallthru
      _
    %p60 = scmp.eq.s32.totalorder 0, 0
    // Predicated region
    $region26: #{tpu_custom_call.1} parent=1 // pred_check
      %p61 = pneg %p60
    $region27: #{tpu_custom_call.1} parent=1 // pred_check_branch
      %63 = sbr.rel (%p61) target = $region29
    $region28: #{tpu_custom_call.1} parent=1 // pred_region
      %64 = vst [vmem:[#allocation8] sm:$0xff] 0.0
      %65 = vst [vmem:[#allocation8 + $0x8] sm:$0xff] 0.0
      %66 = vst [vmem:[#allocation8 + $0x10] sm:$0xff] 0.0
    $region29: #{tpu_custom_call.1} parent=1 // pred_fallthru
      _
    %p67 = scmp.eq.s32.totalorder 0, 0
    %p68 = scmp.ne.s32.totalorder 0, 0
    // Predicated region
    $region30: #{tpu_custom_call.1} parent=1 // pred_check
      %p69 = pneg %p68
    $region31: #{tpu_custom_call.1} parent=1 // pred_check_branch
      %71 = sbr.rel (%p69) target = $region33
    $region32: #{tpu_custom_call.1} parent=1 // pred_region
      %v72 = vld [vmem:[#allocation2] sm:$0xff]
      %v73 = vld [vmem:[#allocation2 + $0x10] sm:$0xff]
      %v74 = vld [vmem:[#allocation2 + $0x20] sm:$0xff]
      %v75 = vld [vmem:[#allocation5] sm:$0xff]
      %v76 = vld [vmem:[#allocation5 + $0x10] sm:$0xff]
      %v77 = vld [vmem:[#allocation5 + $0x20] sm:$0xff]
      %v78 = vsub.f32 %v72, %v75
      %v79 = vsub.f32 %v73, %v76
      %v80 = vsub.f32 %v74, %v77
      %v81 = vand.u32 2147483647, %v78
      %v82 = vand.u32 2147483647, %v79
      %v83 = vand.u32 2147483647, %v80
      %v84 = vmul.f32 %v78, %v78
      %v85 = vmul.f32 %v79, %v79
      %v86 = vmul.f32 %v80, %v80
      %v87 = vmul.f32 %v84, 0.5
      %v88 = vmul.f32 %v85, 0.5
      %v89 = vmul.f32 %v86, 0.5
      %v90 = vsub.f32 %v81, 1.0
      %v91 = vsub.f32 %v82, 1.0
      %v92 = vsub.f32 %v83, 1.0
      %v93 = vtanh.pop %v90
      %v94 = vtanh.pop %v91
      %v95 = vtanh.pop %v92
      %v96 = vadd.f32 %v93, 1.0
      %v97 = vadd.f32 %v94, 1.0
      %v98 = vadd.f32 %v95, 1.0
      %v99 = vmul.f32 %v96, 0.5
      %v100 = vmul.f32 %v97, 0.5
      %v101 = vmul.f32 %v98, 0.5
      %v102 = vsub.f32 %v87, %v81
      %v103 = vsub.f32 %v88, %v82
      %v104 = vsub.f32 %v89, %v83
      %v105 = vmul.f32 %v99, %v102
      %v106 = vmul.f32 %v100, %v103
      %v107 = vmul.f32 %v101, %v104
      %v108 = vadd.f32 %v81, %v105
      %v109 = vadd.f32 %v82, %v106
      %v110 = vadd.f32 %v83, %v107
      %v111 = vld [vmem:[#allocation7] sm:$0x1]
      %v113 = vperm.slane %v111, 0
      %v115 = vmul.f32 %v108, %v113
      %v116 = vmul.f32 %v109, %v113
      %v117 = vmul.f32 %v110, %v113
      %v118 = vld [vmem:[#allocation2 + $0x8] sm:$0xff]
      %v119 = vld [vmem:[#allocation2 + $0x18] sm:$0xff]
      %v120 = vld [vmem:[#allocation2 + $0x28] sm:$0xff]
      %v121 = vld [vmem:[#allocation5 + $0x8] sm:$0xff]
      %v122 = vld [vmem:[#allocation5 + $0x18] sm:$0xff]
      %v123 = vld [vmem:[#allocation5 + $0x28] sm:$0xff]
      %v124 = vsub.f32 %v118, %v121
      %v125 = vsub.f32 %v119, %v122
      %v126 = vsub.f32 %v120, %v123
      %v127 = vand.u32 2147483647, %v124
      %v128 = vand.u32 2147483647, %v125
      %v129 = vand.u32 2147483647, %v126
      %v130 = vmul.f32 %v124, %v124
      %v131 = vmul.f32 %v125, %v125
      %v132 = vmul.f32 %v126, %v126
      %v133 = vmul.f32 %v130, 0.5
      %v134 = vmul.f32 %v131, 0.5
      %v135 = vmul.f32 %v132, 0.5
      %v136 = vsub.f32 %v127, 1.0
      %v137 = vsub.f32 %v128, 1.0
      %v138 = vsub.f32 %v129, 1.0
      %v139 = vtanh.pop %v136
      %v140 = vtanh.pop %v137
      %v141 = vtanh.pop %v138
      %v142 = vadd.f32 %v139, 1.0
      %v143 = vadd.f32 %v140, 1.0
      %v144 = vadd.f32 %v141, 1.0
      %v145 = vmul.f32 %v142, 0.5
      %v146 = vmul.f32 %v143, 0.5
      %v147 = vmul.f32 %v144, 0.5
      %v148 = vsub.f32 %v133, %v127
      %v149 = vsub.f32 %v134, %v128
      %v150 = vsub.f32 %v135, %v129
      %v151 = vmul.f32 %v145, %v148
      %v152 = vmul.f32 %v146, %v149
      %v153 = vmul.f32 %v147, %v150
      %v154 = vadd.f32 %v127, %v151
      %v155 = vadd.f32 %v128, %v152
      %v156 = vadd.f32 %v129, %v153
      %v157 = vld [vmem:[#allocation7 + $0x1] sm:$0x1]
      %v159 = vperm.slane %v157, 0
      %v161 = vmul.f32 %v154, %v159
      %v162 = vmul.f32 %v155, %v159
      %v163 = vmul.f32 %v156, %v159
      %v164 = vadd.f32 %v115, %v161
      %v165 = vadd.f32 %v116, %v162
      %v166 = vadd.f32 %v117, %v163
      %v167 = vld [vmem:[#allocation8] sm:$0xff]
      %v168 = vld [vmem:[#allocation8 + $0x8] sm:$0xff]
      %v169 = vld [vmem:[#allocation8 + $0x10] sm:$0xff]
      %v170 = vadd.f32 %v167, %v164
      %v171 = vadd.f32 %v168, %v165
      %v172 = vadd.f32 %v169, %v166
      %173 = vst [vmem:[#allocation8] sm:$0xff] %v170
      %174 = vst [vmem:[#allocation8 + $0x8] sm:$0xff] %v171
      %175 = vst [vmem:[#allocation8 + $0x10] sm:$0xff] %v172
    $region33: #{tpu_custom_call.1} parent=1 // pred_fallthru
      _
    // Predicated region
    $region34: #{tpu_custom_call.1} parent=1 // pred_check
      %p176 = pneg %p67
    $region35: #{tpu_custom_call.1} parent=1 // pred_check_branch
      %178 = sbr.rel (%p176) target = $region37
    $region36: #{tpu_custom_call.1} parent=1 // pred_region
      %v179 = vlaneseq
      %v180 = vshrl.u32 %v179, 7
      %v181 = vadd.s32 %v180, 8
      %v182 = vadd.s32 %v180, 16
      %s183 = smul.u32 0, 24
      %v184 = vstv %s183
      %v185 = vadd.s32 %v180, %v184
      %v186 = vadd.s32 %v181, %v184
      %v187 = vadd.s32 %v182, %v184
      %vm188 = vcmp.lt.s32.totalorder %v185, 20
      %vm189 = vcmp.lt.s32.totalorder %v186, 20
      %vm190 = vcmp.lt.s32.totalorder %v187, 20
      %v191 = vld [vmem:[#allocation2] sm:$0xff]
      %v192 = vld [vmem:[#allocation2 + $0x10] sm:$0xff]
      %v193 = vld [vmem:[#allocation2 + $0x20] sm:$0xff]
      %v194 = vld [vmem:[#allocation5] sm:$0xff]
      %v195 = vld [vmem:[#allocation5 + $0x10] sm:$0xff]
      %v196 = vld [vmem:[#allocation5 + $0x20] sm:$0xff]
      %v197 = vsub.f32 %v191, %v194
      %v198 = vsub.f32 %v192, %v195
      %v199 = vsub.f32 %v193, %v196
      %v200 = vsel %vm188, %v197, 0.0
      %v201 = vsel %vm189, %v198, 0.0
      %v202 = vsel %vm190, %v199, 0.0
      %v203 = vand.u32 2147483647, %v200
      %v204 = vand.u32 2147483647, %v201
      %v205 = vand.u32 2147483647, %v202
      %v206 = vmul.f32 %v200, %v200
      %v207 = vmul.f32 %v201, %v201
      %v208 = vmul.f32 %v202, %v202
      %v209 = vmul.f32 %v206, 0.5
      %v210 = vmul.f32 %v207, 0.5
      %v211 = vmul.f32 %v208, 0.5
      %v212 = vsub.f32 %v203, 1.0
      %v213 = vsub.f32 %v204, 1.0
      %v214 = vsub.f32 %v205, 1.0
      %v215 = vtanh.pop %v212
      %v216 = vtanh.pop %v213
      %v217 = vtanh.pop %v214
      %v218 = vadd.f32 %v215, 1.0
      %v219 = vadd.f32 %v216, 1.0
      %v220 = vadd.f32 %v217, 1.0
      %v221 = vmul.f32 %v218, 0.5
      %v222 = vmul.f32 %v219, 0.5
      %v223 = vmul.f32 %v220, 0.5
      %v224 = vsub.f32 %v209, %v203
      %v225 = vsub.f32 %v210, %v204
      %v226 = vsub.f32 %v211, %v205
      %v227 = vmul.f32 %v221, %v224
      %v228 = vmul.f32 %v222, %v225
      %v229 = vmul.f32 %v223, %v226
      %v230 = vadd.f32 %v203, %v227
      %v231 = vadd.f32 %v204, %v228
      %v232 = vadd.f32 %v205, %v229
      %v233 = vld [vmem:[#allocation7] sm:$0x1]
      %v235 = vperm.slane %v233, 0
      %v237 = vmul.f32 %v230, %v235
      %v238 = vmul.f32 %v231, %v235
      %v239 = vmul.f32 %v232, %v235
      %v240 = vld [vmem:[#allocation2 + $0x8] sm:$0xff]
      %v241 = vld [vmem:[#allocation2 + $0x18] sm:$0xff]
      %v242 = vld [vmem:[#allocation2 + $0x28] sm:$0xff]
      %v243 = vld [vmem:[#allocation5 + $0x8] sm:$0xff]
      %v244 = vld [vmem:[#allocation5 + $0x18] sm:$0xff]
      %v245 = vld [vmem:[#allocation5 + $0x28] sm:$0xff]
      %v246 = vsub.f32 %v240, %v243
      %v247 = vsub.f32 %v241, %v244
      %v248 = vsub.f32 %v242, %v245
      %v249 = vsel %vm188, %v246, 0.0
      %v250 = vsel %vm189, %v247, 0.0
      %v251 = vsel %vm190, %v248, 0.0
      %v252 = vand.u32 2147483647, %v249
      %v253 = vand.u32 2147483647, %v250
      %v254 = vand.u32 2147483647, %v251
      %v255 = vmul.f32 %v249, %v249
      %v256 = vmul.f32 %v250, %v250
      %v257 = vmul.f32 %v251, %v251
      %v258 = vmul.f32 %v255, 0.5
      %v259 = vmul.f32 %v256, 0.5
      %v260 = vmul.f32 %v257, 0.5
      %v261 = vsub.f32 %v252, 1.0
      %v262 = vsub.f32 %v253, 1.0
      %v263 = vsub.f32 %v254, 1.0
      %v264 = vtanh.pop %v261
      %v265 = vtanh.pop %v262
      %v266 = vtanh.pop %v263
      %v267 = vadd.f32 %v264, 1.0
      %v268 = vadd.f32 %v265, 1.0
      %v269 = vadd.f32 %v266, 1.0
      %v270 = vmul.f32 %v267, 0.5
      %v271 = vmul.f32 %v268, 0.5
      %v272 = vmul.f32 %v269, 0.5
      %v273 = vsub.f32 %v258, %v252
      %v274 = vsub.f32 %v259, %v253
      %v275 = vsub.f32 %v260, %v254
      %v276 = vmul.f32 %v270, %v273
      %v277 = vmul.f32 %v271, %v274
      %v278 = vmul.f32 %v272, %v275
      %v279 = vadd.f32 %v252, %v276
      %v280 = vadd.f32 %v253, %v277
      %v281 = vadd.f32 %v254, %v278
      %v282 = vld [vmem:[#allocation7 + $0x1] sm:$0x1]
      %v284 = vperm.slane %v282, 0
      %v286 = vmul.f32 %v279, %v284
      %v287 = vmul.f32 %v280, %v284
      %v288 = vmul.f32 %v281, %v284
      %v289 = vadd.f32 %v237, %v286
      %v290 = vadd.f32 %v238, %v287
      %v291 = vadd.f32 %v239, %v288
      %v292 = vld [vmem:[#allocation8] sm:$0xff]
      %v293 = vld [vmem:[#allocation8 + $0x8] sm:$0xff]
      %v294 = vld [vmem:[#allocation8 + $0x10] sm:$0xff]
      %v295 = vadd.f32 %v292, %v289
      %v296 = vadd.f32 %v293, %v290
      %v297 = vadd.f32 %v294, %v291
      %298 = vst [vmem:[#allocation8] sm:$0xff] %v295
      %299 = vst [vmem:[#allocation8 + $0x8] sm:$0xff] %v296
      %300 = vst [vmem:[#allocation8 + $0x10] sm:$0xff] %v297
    $region37: #{tpu_custom_call.1} parent=1 // pred_fallthru
      _
    // Predicated region
    $region38: #{tpu_custom_call.1} parent=1 // pred_check
      _
    $region39: #{tpu_custom_call.1} parent=1 // pred_check_branch
      %302 = sbr.rel (0) target = $region41
    $region40: #{tpu_custom_call.1} parent=1 // pred_region
      %304 = vsyncadd [#allocation4], 0
      %s305 = sshll.u32 [#allocation8], 4
      %s306 = int_to_ptr.vmem [resolvable:$true] %s305
      %s307 = sshll.u32 %s3, 4
      %s308 = int_to_ptr.hbm [resolvable:$true] %s307
      %313 = dma.vmem_to_hbm [thread:$0]  %s306, 384, %s308, [#allocation4], 128, 128, 8
    $region41: #{tpu_custom_call.1} parent=1 // pred_fallthru
      _
    // Predicated region
    $region42: #{tpu_custom_call.1} parent=1 // pred_check
      _
    $region43: #{tpu_custom_call.1} parent=1 // pred_check_branch
      %315 = sbr.rel (0) target = $region45
    $region44: #{tpu_custom_call.1} parent=1 // pred_region
      %317 = dma.done [#allocation4], 384
    $region45: #{tpu_custom_call.1} parent=1 // pred_fallthru
      _
    %318 = vsyncpa [#allocation3], 1
    %319 = vsyncpa [#allocation6], 1
    %320 = vsyncpa [#allocation4], 1

</llo_original>
